<compile_context>
chip_gen: v5e
topology: v5e:2x2
jax: 0.10.0
libtpu: 0.0.40
codegen_flags: <defaults>
</compile_context>

<pallas_src>
import jax
import jax.numpy as jnp
from jax import lax
from jax.experimental import pallas as pl
from jax.experimental.pallas import tpu as pltpu

N = 20            # feature dim (Linear(20, 20), rand_weight (20, 20))
ROW_W1 = 0        # rows [0, 20)  : W1 = W^T @ rand_weight   (layers 1+2 fused)
ROW_WT = 24       # rows [24, 44) : W^T                      (8-sublane aligned start)
ROW_C1 = 48       # row  48       : c1 = b @ rand_weight + 1 (8-sublane aligned start)
ROW_B = 56        # row  56       : bias                     (8-sublane aligned start)
SLAB_ROWS = 64    # total packed-parameter rows (multiple of 8)


def fixed_hidden_mlp_kernel(x_ref, p_ref, out_ref):
    x = x_ref[...]                               # (2, 20)
    w1 = p_ref[ROW_W1:ROW_W1 + N, :]             # (20, 20)  W^T @ rand_weight
    wt = p_ref[ROW_WT:ROW_WT + N, :]             # (20, 20)  W^T
    c1 = p_ref[ROW_C1:ROW_C1 + 1, :]             # (1, 20)   b @ rand_weight + 1
    b = p_ref[ROW_B:ROW_B + 1, :]                # (1, 20)   bias

    # X = relu(self.linear(X) @ rand_weight + 1)   (layer 1 fused into W1/c1)
    h = jnp.maximum(
        jnp.dot(x, w1, preferred_element_type=jnp.float32) + c1, 0.0)
    # X = self.linear(X)   (same layer, shared weights)
    h = jnp.dot(h, wt, preferred_element_type=jnp.float32) + b

    # while X.abs().sum() > 1: X /= 2 ; return X.sum()
    # Halving is exact in fp32 and commutes with the reductions, so the loop is
    # equivalent to scaling by 2^{-n} with n = (e + (frac != 0)) if s > 1 else 0,
    # where s = sum(|X|) = 1.frac * 2^e.  Compute n with exact bit ops (no EUP).
    t = jnp.sum(h)                               # sum(X)       (scalar)
    s = jnp.sum(jnp.abs(h))                      # sum(|X|)     (scalar, >= 0)

    s_v = s * jnp.ones((1, 1), jnp.float32)      # lift scalar into a vreg for bit ops
    bits = pltpu.bitcast(s_v, jnp.int32)         # (1, 1) int32
    e = (bits >> 23) - 127                       # unbiased exponent
    frac = bits & 0x7FFFFF                       # mantissa bits
    n = jnp.where(s_v > 1.0, e + jnp.where(frac > 0, 1, 0), 0)
    scale = pltpu.bitcast((127 - n) << 23, jnp.float32)   # exact 2^{-n}, (1, 1)

    out_ref[0] = t * jnp.sum(scale)


def pack_params(w, b, rw):
    """One-time ("module init") parameter packing — NOT in the per-call path."""
    w = jnp.asarray(w, jnp.float32)
    rw = jnp.asarray(rw, jnp.float32)
    b = jnp.asarray(b, jnp.float32).reshape(1, N)
    wt = w.T                                     # (20, 20)
    w1 = wt @ rw                                 # (20, 20)  W^T @ rand_weight
    c1 = b @ rw + 1.0                            # (1, 20)   b @ rand_weight + 1
    slab = jnp.zeros((SLAB_ROWS, N), jnp.float32)
    slab = slab.at[ROW_W1:ROW_W1 + N, :].set(w1)
    slab = slab.at[ROW_WT:ROW_WT + N, :].set(wt)
    slab = slab.at[ROW_C1, :].set(c1[0])
    slab = slab.at[ROW_B, :].set(b[0])
    return slab


def fixed_hidden_mlp(x, params):
    """Per-call forward: a single gridless, fully VMEM-resident pallas_call."""
    out = pl.pallas_call(
        fixed_hidden_mlp_kernel,
        out_shape=jax.ShapeDtypeStruct((1,), jnp.float32),
        in_specs=[
            pl.BlockSpec(memory_space=pltpu.VMEM),   # x, fully resident
            pl.BlockSpec(memory_space=pltpu.VMEM),   # packed params, fully resident
        ],
        out_specs=pl.BlockSpec(memory_space=pltpu.SMEM),   # 1-D scalar result via SMEM
        cost_estimate=pl.CostEstimate(
            flops=3500, transcendentals=0, bytes_accessed=5284),
    )(x, params)
    return out[0]


def reference_forward(x, w, b, rw):
    # Mirrors the original (unfused) PyTorch module semantics.
    h = x @ w.T + b
    h = jnp.maximum(h @ rw + 1.0, 0.0)
    h = h @ w.T + b
    h = lax.while_loop(lambda v: jnp.sum(jnp.abs(v)) > 1.0, lambda v: v * 0.5, h)
    return jnp.sum(h)


if __name__ == "__main__":
    key = jax.random.PRNGKey(0)
    k_x, k_rw, k_w, k_b = jax.random.split(key, 4)

    # Input X = torch.rand(2, 20)  -> uniform [0, 1)
    X = jax.random.uniform(k_x, (2, N), dtype=jnp.float32)
    # self.rand_weight = torch.rand((20, 20))
    rand_weight = jax.random.uniform(k_rw, (N, N), dtype=jnp.float32)
    # nn.Linear(20, 20): weight/bias ~ U(-1/sqrt(20), 1/sqrt(20))
    bound = 1.0 / jnp.sqrt(jnp.float32(N))
    W = jax.random.uniform(k_w, (N, N), dtype=jnp.float32, minval=-bound, maxval=bound)
    bvec = jax.random.uniform(k_b, (1, N), dtype=jnp.float32, minval=-bound, maxval=bound)

    # One-time packing (module init) — hoisted out of the per-call path.
    params = jax.block_until_ready(pack_params(W, bvec, rand_weight))

    out = jax.block_until_ready(fixed_hidden_mlp(X, params))
    ref = jax.block_until_ready(reference_forward(X, W, bvec, rand_weight))
    assert jnp.allclose(out, ref, rtol=1e-5, atol=1e-5), (out, ref)

    print("KERNEL_OK")
</pallas_src>

<mosaic_0001>
module attributes {stable_mosaic.version = 11 : i64} {
  func.func @fixed_hidden_mlp_kernel(%arg0: memref<2x20xf32, #tpu.memory_space<vmem>>, %arg1: memref<64x20xf32, #tpu.memory_space<vmem>>, %arg2: memref<1xf32, #tpu.memory_space<smem>>) attributes {dimension_semantics = [], scalar_prefetch = 0 : i64, scratch_operands = 0 : i64, tpu.core_type = #tpu.core_type<tc>} {
    %c0 = arith.constant 0 : index
    %c0_0 = arith.constant 0 : index
    %0 = vector.load %arg0[%c0, %c0_0] : memref<2x20xf32, #tpu.memory_space<vmem>>, vector<2x20xf32>
    %c0_1 = arith.constant 0 : index
    %c0_2 = arith.constant 0 : index
    %1 = vector.load %arg1[%c0_1, %c0_2] : memref<64x20xf32, #tpu.memory_space<vmem>>, vector<20x20xf32>
    %c24 = arith.constant 24 : index
    %c0_3 = arith.constant 0 : index
    %2 = vector.load %arg1[%c24, %c0_3] : memref<64x20xf32, #tpu.memory_space<vmem>>, vector<20x20xf32>
    %c48 = arith.constant 48 : index
    %c0_4 = arith.constant 0 : index
    %3 = vector.load %arg1[%c48, %c0_4] : memref<64x20xf32, #tpu.memory_space<vmem>>, vector<1x20xf32>
    %c56 = arith.constant 56 : index
    %c0_5 = arith.constant 0 : index
    %4 = vector.load %arg1[%c56, %c0_5] : memref<64x20xf32, #tpu.memory_space<vmem>>, vector<1x20xf32>
    %cst = arith.constant dense<0.000000e+00> : vector<2x20xf32>
    %5 = tpu.matmul %0, %1, %cst {dimension_numbers = #tpu.dot_dimension_numbers<[1], [0], [0], [1], [0, 0, 1, 1], [], []>} : vector<2x20xf32>, vector<20x20xf32>, vector<2x20xf32> -> vector<2x20xf32>
    %6 = vector.broadcast %3 : vector<1x20xf32> to vector<2x20xf32>
    %7 = arith.addf %5, %6 : vector<2x20xf32>
    %cst_6 = arith.constant 0.000000e+00 : f32
    %8 = vector.broadcast %cst_6 : f32 to vector<2x20xf32>
    %9 = arith.maximumf %7, %8 : vector<2x20xf32>
    %cst_7 = arith.constant dense<0.000000e+00> : vector<2x20xf32>
    %10 = tpu.matmul %9, %2, %cst_7 {dimension_numbers = #tpu.dot_dimension_numbers<[1], [0], [0], [1], [0, 0, 1, 1], [], []>} : vector<2x20xf32>, vector<20x20xf32>, vector<2x20xf32> -> vector<2x20xf32>
    %11 = vector.broadcast %4 : vector<1x20xf32> to vector<2x20xf32>
    %12 = arith.addf %10, %11 : vector<2x20xf32>
    %13 = vector.shape_cast %12 : vector<2x20xf32> to vector<1x2x20xf32>
    %cst_8 = arith.constant dense<0.000000e+00> : vector<1xf32>
    %14 = vector.multi_reduction <add>, %13, %cst_8 [1, 2] : vector<1x2x20xf32> to vector<1xf32>
    %15 = vector.shape_cast %14 : vector<1xf32> to vector<1x1x1xf32>
    %16 = vector.extract %15[0, 0, 0] : f32 from vector<1x1x1xf32>
    %17 = math.absf %12 : vector<2x20xf32>
    %18 = vector.shape_cast %17 : vector<2x20xf32> to vector<1x2x20xf32>
    %cst_9 = arith.constant dense<0.000000e+00> : vector<1xf32>
    %19 = vector.multi_reduction <add>, %18, %cst_9 [1, 2] : vector<1x2x20xf32> to vector<1xf32>
    %20 = vector.shape_cast %19 : vector<1xf32> to vector<1x1x1xf32>
    %21 = vector.extract %20[0, 0, 0] : f32 from vector<1x1x1xf32>
    %cst_10 = arith.constant 1.000000e+00 : f32
    %22 = vector.broadcast %cst_10 : f32 to vector<1x1xf32>
    %23 = vector.broadcast %21 : f32 to vector<1x1xf32>
    %24 = arith.mulf %23, %22 : vector<1x1xf32>
    %25 = tpu.bitcast %24 : vector<1x1xf32> -> vector<1x1xi32>
    %c23_i32 = arith.constant 23 : i32
    %26 = vector.broadcast %c23_i32 : i32 to vector<1x1xi32>
    %27 = arith.shrsi %25, %26 : vector<1x1xi32>
    %c127_i32 = arith.constant 127 : i32
    %28 = vector.broadcast %c127_i32 : i32 to vector<1x1xi32>
    %29 = arith.subi %27, %28 : vector<1x1xi32>
    %c8388607_i32 = arith.constant 8388607 : i32
    %30 = vector.broadcast %c8388607_i32 : i32 to vector<1x1xi32>
    %31 = arith.andi %25, %30 : vector<1x1xi32>
    %cst_11 = arith.constant 1.000000e+00 : f32
    %32 = vector.broadcast %cst_11 : f32 to vector<1x1xf32>
    %33 = arith.cmpf ogt, %24, %32 : vector<1x1xf32>
    %c0_i32 = arith.constant 0 : i32
    %34 = vector.broadcast %c0_i32 : i32 to vector<1x1xi32>
    %35 = arith.cmpi sgt, %31, %34 : vector<1x1xi32>
    %c1_i32 = arith.constant 1 : i32
    %c0_i32_12 = arith.constant 0 : i32
    %36 = vector.broadcast %c1_i32 : i32 to vector<1x1xi32>
    %37 = vector.broadcast %c0_i32_12 : i32 to vector<1x1xi32>
    %38 = arith.select %35, %36, %37 : vector<1x1xi1>, vector<1x1xi32>
    %39 = arith.addi %29, %38 : vector<1x1xi32>
    %c0_i32_13 = arith.constant 0 : i32
    %40 = vector.broadcast %c0_i32_13 : i32 to vector<1x1xi32>
    %41 = arith.select %33, %39, %40 : vector<1x1xi1>, vector<1x1xi32>
    %c127_i32_14 = arith.constant 127 : i32
    %42 = vector.broadcast %c127_i32_14 : i32 to vector<1x1xi32>
    %43 = arith.subi %42, %41 : vector<1x1xi32>
    %c23_i32_15 = arith.constant 23 : i32
    %44 = vector.broadcast %c23_i32_15 : i32 to vector<1x1xi32>
    %45 = arith.shli %43, %44 : vector<1x1xi32>
    %46 = tpu.bitcast %45 : vector<1x1xi32> -> vector<1x1xf32>
    %47 = vector.shape_cast %46 : vector<1x1xf32> to vector<1x1x1xf32>
    %cst_16 = arith.constant dense<0.000000e+00> : vector<1xf32>
    %48 = vector.multi_reduction <add>, %47, %cst_16 [1, 2] : vector<1x1x1xf32> to vector<1xf32>
    %49 = vector.shape_cast %48 : vector<1xf32> to vector<1x1x1xf32>
    %50 = vector.extract %49[0, 0, 0] : f32 from vector<1x1x1xf32>
    %51 = arith.mulf %16, %50 : f32
    %c0_17 = arith.constant 0 : index
    %52 = memref.load %arg2[%c0_17] : memref<1xf32, #tpu.memory_space<smem>>
    memref.store %51, %arg2[%c0_17] : memref<1xf32, #tpu.memory_space<smem>>
    return
  }
}

</mosaic_0001>

<llo_original>
// kernel: tpu_custom_call.1
$region0: #{tpu_custom_call.1}
  #allocation0 [shape = 'u32[]', space=smem, size = 0x4, offset = 0x4, fixed_abs, tag = 'smem constant byte address 0x4 - core index']
  #allocation1 [shape = 'u32[72,128]{1,0:T(1,128)}', space=vmem, size = 0x9000, scoped, tag = 'internal scratch']
  %s0 = inlined_call_operand.vmem [shape: f32[2,20], index: 0, kind: input, shape index: {}]
  %s1 = inlined_call_operand.vmem [shape: f32[64,20], index: 1, kind: input, shape index: {}]
  %s2 = inlined_call_operand.hbm [shape: f32[1], index: 2, kind: output, shape index: {}]
  %s3 = sld [smem:[#allocation0]]
  $region18: #{tpu_custom_call.1} parent=0
    _
  %s5 = ssub.s32 1, %s3
  %s6 = scalar_select 0, %s5, %s3
  $region1: #{tpu_custom_call.1} parent=0
    #allocation2 [shape = 'u8[512]{0}', space=smem, size = 0x200, scoped, tag = 'output window, operand 0, single buffered']
    #allocation3 [shape = 's32[1]{0}', space=sflag, size = 0x4, scoped, tag = 'scoped memory for tpu_custom_call.1']
    %7 = vsyncpa [#allocation3], 0
    // Predicated region
    $region2: #{tpu_custom_call.1} parent=1 // pred_check
      _
    $region3: #{tpu_custom_call.1} parent=1 // pred_check_branch
      %9 = sbr.rel (0) target = $region5
    $region4: #{tpu_custom_call.1} parent=1 // pred_region
      _
    $region5: #{tpu_custom_call.1} parent=1 // pred_fallthru
      _
    // Predicated region
    $region6: #{tpu_custom_call.1} parent=1 // pred_check
      _
    $region7: #{tpu_custom_call.1} parent=1 // pred_check_branch
      %11 = sbr.rel (0) target = $region9
    $region8: #{tpu_custom_call.1} parent=1 // pred_region
      _
    $region9: #{tpu_custom_call.1} parent=1 // pred_fallthru
      _
    %v12 = vld [vmem:[%s0] sm:$0x3]
    %v13 = vld [vmem:[%s1] sm:$0xff]
    %v14 = vld [vmem:[%s1 + $0x8] sm:$0xff]
    %v15 = vld [vmem:[%s1 + $0x10] sm:$0xf]
    %v16 = vld [vmem:[%s1 + $0x18] sm:$0xff]
    %v17 = vld [vmem:[%s1 + $0x20] sm:$0xff]
    %v18 = vld [vmem:[%s1 + $0x28] sm:$0xf]
    %v19 = vld [vmem:[%s1 + $0x30] sm:$0x1]
    %v20 = vld [vmem:[%s1 + $0x38] sm:$0x1]
    %v21 = vperm.slane %v19, 0
    %vm22 = vcmask 162816
    %v24 = vsel %vm22, %v12, 0
    %vm26 = vcmask 1043456
    %v28 = vsel %vm26, %v15, 0
    %30 = vmatpush.msra.mxu0 0.0
    %31 = vmatpush.msra.mxu0 0.0
    %32 = vmatpush.msra.mxu0 0.0
    %33 = vmatpush.msra.mxu0 0.0
    %34 = vmatpush.msra.mxu0 0.0
    %35 = vmatpush.msra.mxu0 0.0
    %36 = vmatpush.msra.mxu0 0.0
    %37 = vmatpush.msra.mxu0 0.0
    %38 = vmatpush.msra.mxu0 0.0
    %39 = vmatpush.msra.mxu0 0.0
    %40 = vmatpush.msra.mxu0 0.0
    %41 = vmatpush.msra.mxu0 0.0
    %42 = vmatpush.msra.mxu0 0.0
    %43 = vmatpush.msra.mxu0 %v28
    %44 = vmatpush.msra.mxu0 %v14
    %45 = vmatpush.msra.mxu0 %v13
    %46 = vmatmul.f32.gmra.mxu0 %v24
    %v47 = vpop.f32.mrf.mxu0
    %v48 = vadd.f32 %v21, %v47
    %49 = vdwg.mxu0
    %v50 = vmax.f32 %v48, 0.0
    %v51 = vperm.slane %v20, 0
    %v53 = vsel %vm22, %v50, 0
    %v56 = vsel %vm26, %v18, 0
    %58 = vmatpush.msra.mxu0 0.0
    %59 = vmatpush.msra.mxu0 0.0
    %60 = vmatpush.msra.mxu0 0.0
    %61 = vmatpush.msra.mxu0 0.0
    %62 = vmatpush.msra.mxu0 0.0
    %63 = vmatpush.msra.mxu0 0.0
    %64 = vmatpush.msra.mxu0 0.0
    %65 = vmatpush.msra.mxu0 0.0
    %66 = vmatpush.msra.mxu0 0.0
    %67 = vmatpush.msra.mxu0 0.0
    %68 = vmatpush.msra.mxu0 0.0
    %69 = vmatpush.msra.mxu0 0.0
    %70 = vmatpush.msra.mxu0 0.0
    %71 = vmatpush.msra.mxu0 %v56
    %72 = vmatpush.msra.mxu0 %v17
    %73 = vmatpush.msra.mxu0 %v16
    %74 = vmatmul.f32.gmra.mxu0 %v53
    %v75 = vpop.f32.mrf.mxu0
    %v76 = vadd.f32 %v51, %v75
    %77 = vdwg.mxu0
    %vm78 = vcmask 156672
    %v79 = vsel %vm78, %v76, 0.0
    %80 = vadd.xlane.f32.xlu0 %v79
    %v81 = vpop.xlane.xlu0 %80
    %v82 = vrot.slane %v81, 4
    %v83 = vadd.f32 %v81, %v82
    %v84 = vrot.slane %v83, 2
    %v85 = vadd.f32 %v83, %v84
    %v86 = vrot.slane %v85, 1
    %v87 = vadd.f32 %v85, %v86
    %s88 = vtos %v87
    %v89 = vand.u32 2147483647, %v76
    %v90 = vsel %vm78, %v89, 0.0
    %91 = vadd.xlane.f32.xlu0 %v90
    %v92 = vpop.xlane.xlu0 %91
    %v93 = vrot.slane %v92, 4
    %v94 = vadd.f32 %v92, %v93
    %v95 = vrot.slane %v94, 2
    %v96 = vadd.f32 %v94, %v95
    %v97 = vrot.slane %v96, 1
    %v98 = vadd.f32 %v96, %v97
    %s99 = vtos %v98
    %v100 = vstv %s99
    %v102 = vshra.s32 %v100, 23
    %v103 = vsub.s32 %v102, 127
    %v104 = vand.u32 %v100, 8388607
    %vm105 = vcmp.gt.f32.partialorder %v100, 1.0
    %vm106 = vcmp.gt.s32.totalorder %v104, 0
    %v107 = vsel %vm106, 1, 0
    %v108 = vadd.s32 %v103, %v107
    %v109 = vsel %vm105, %v108, 0
    %v110 = vsub.s32 127, %v109
    %v111 = vshll.u32 %v110, 23
    %v113 = vadd.f32 %v111, 0.0
    %s114 = vtos %v113
    %s115 = smul.f32 %s88, %s114
    %s116 = scalar_lea.smem [#allocation2], 0
    %117 = sst [smem:[%s116]] %s115
    // Predicated region
    $region10: #{tpu_custom_call.1} parent=1 // pred_check
      _
    $region11: #{tpu_custom_call.1} parent=1 // pred_check_branch
      %119 = sbr.rel (0) target = $region13
    $region12: #{tpu_custom_call.1} parent=1 // pred_region
      %121 = vsyncadd [#allocation3], 0
      %s123 = sshll.u32 %s2, 4
      %s124 = int_to_ptr.hbm [resolvable:$true] %s123
      %126 = dma.smem_to_hbm [#allocation2], 16, %s124, [#allocation3]
    $region13: #{tpu_custom_call.1} parent=1 // pred_fallthru
      _
    // Predicated region
    $region14: #{tpu_custom_call.1} parent=1 // pred_check
      _
    $region15: #{tpu_custom_call.1} parent=1 // pred_check_branch
      %128 = sbr.rel (0) target = $region17
    $region16: #{tpu_custom_call.1} parent=1 // pred_region
      %130 = dma.done [#allocation3], 16
    $region17: #{tpu_custom_call.1} parent=1 // pred_fallthru
      _
    %131 = sfence
    %132 = vsyncpa [#allocation3], 1

</llo_original>
